<compile_context>
chip_gen: v7x
topology: tpu7x:2x2x1
jax: 0.10.0
libtpu: 0.0.40
codegen_flags: <defaults>
</compile_context>

<pallas_src>
import functools

import jax
import jax.numpy as jnp
from jax.experimental import pallas as pl
from jax.experimental.pallas import tpu as pltpu


def _tokenizer_kernel(p_ref, w_ref, o_ref, *, OH, OW, PH, PW, Cout):
    """One batch block per grid step.

    p_ref : (Bt, OH, OW*K*K*Cin)        im2col patches (bf16, lane-dense)
    w_ref : (OW*K*K*Cin, OW*Cout)       block-diagonal conv weights (bf16)
    o_ref : (Bt, PH, PW*Cout)           tokenized output (lane-dense)
    """
    Bt = p_ref.shape[0]
    OWK = p_ref.shape[2]
    OWC = OW * Cout

    # ---- Conv2d (stride=1) as a single MXU matmul, f32 accumulation ----
    lhs = p_ref[...].reshape(Bt * OH, OWK)
    conv = jnp.dot(lhs, w_ref[...], preferred_element_type=jnp.float32)
    c = conv.reshape(Bt, OH, OWC)        # lane index = w*Cout + cout

    # activation=None in the module config -> Identity (no-op).

    # ---- MaxPool2d(kernel=3, stride=2, padding=1), separable ----
    # H direction: m[h] = max(c[h-1], c[h], c[h+1]); output row i samples m[2i].
    ninf_row = jnp.full((Bt, 1, OWC), -jnp.inf, dtype=jnp.float32)
    up = jnp.concatenate([c[:, 1:, :], ninf_row], axis=1)     # c[h+1]
    dn = jnp.concatenate([ninf_row, c[:, :-1, :]], axis=1)    # c[h-1]
    hm = jnp.maximum(jnp.maximum(c, up), dn)
    hp = jnp.concatenate([hm[:, 2 * i:2 * i + 1, :] for i in range(PH)],
                         axis=1)                              # (Bt, PH, OW*Cout)

    # W direction: shift by +-Cout lanes; output col j samples col 2j.
    ninf_col = jnp.full((Bt, PH, Cout), -jnp.inf, dtype=jnp.float32)
    lf = jnp.concatenate([ninf_col, hp[:, :, :-Cout]], axis=2)   # col w-1
    rt = jnp.concatenate([hp[:, :, Cout:], ninf_col], axis=2)    # col w+1
    wm = jnp.maximum(jnp.maximum(hp, lf), rt)
    pooled = jnp.concatenate(
        [wm[:, :, 2 * j * Cout:(2 * j + 1) * Cout] for j in range(PW)],
        axis=2)                                               # (Bt, PH, PW*Cout)

    # (PH, PW*Cout) row-major == flatten(2,3).transpose(1,2) layout per image.
    o_ref[...] = pooled.astype(o_ref.dtype)


def _pick_batch_block(B, cap=8):
    """Largest divisor of B that is <= cap while keeping >= 2 grid steps."""
    best = None
    for d in range(1, min(B, cap) + 1):
        if B % d == 0 and B // d >= 2:
            best = d
    return best if best is not None else B


def tokenizer_forward(x_nchw, w_oikk, *, conv_pad=1, pk=3, ps=2, pp=1,
                      batch_block=None):
    """Pallas implementation of Tokenizer.forward.  Returns (B, PH*PW, Cout)."""
    assert (pk, ps, pp) == (3, 2, 1), "pool params fixed to module config"
    B, Cin, H, W = x_nchw.shape
    Cout, _, K, _ = w_oikk.shape
    OH, OW = H, W                                   # stride=1 "same" conv
    PH = (OH + 2 * pp - pk) // ps + 1
    PW = (OW + 2 * pp - pk) // ps + 1
    KKC = K * K * Cin

    # ---- wrapper-side layout plumbing (plain JAX / XLA, runs once) ----
    # im2col: patches[b, h, w*KKC + (kh*K+kw)*Cin + ci] = x_pad[b, h+kh, w+kw, ci]
    x_nhwc = jnp.transpose(x_nchw, (0, 2, 3, 1))
    xp = jnp.pad(x_nhwc, ((0, 0), (conv_pad, conv_pad),
                          (conv_pad, conv_pad), (0, 0)))
    cols = [xp[:, kh:kh + OH, kw:kw + OW, :]
            for kh in range(K) for kw in range(K)]
    patches = jnp.stack(cols, axis=3).reshape(B, OH, OW * KKC)
    patches = patches.astype(jnp.bfloat16)

    # Weights (Cout, Cin, K, K) -> (KKC, Cout), then block-diagonal kron so the
    # matmul output is already (rows=H, lanes=W*Cout) lane-dense.
    w2 = jnp.transpose(w_oikk, (2, 3, 1, 0)).reshape(KKC, Cout)
    wbd = jnp.kron(jnp.eye(OW, dtype=w2.dtype), w2).astype(jnp.bfloat16)

    Bt = _pick_batch_block(B) if batch_block is None else batch_block
    assert B % Bt == 0

    kernel = functools.partial(_tokenizer_kernel, OH=OH, OW=OW, PH=PH, PW=PW,
                               Cout=Cout)

    out = pl.pallas_call(
        kernel,
        out_shape=jax.ShapeDtypeStruct((B, PH, PW * Cout), x_nchw.dtype),
        grid_spec=pltpu.PrefetchScalarGridSpec(
            num_scalar_prefetch=0,
            grid=(B // Bt,),
            in_specs=[
                pl.BlockSpec((Bt, OH, OW * KKC), lambda i: (i, 0, 0)),
                pl.BlockSpec((OW * KKC, OW * Cout), lambda i: (0, 0)),
            ],
            out_specs=pl.BlockSpec((Bt, PH, PW * Cout), lambda i: (i, 0, 0)),
        ),
        compiler_params=pltpu.CompilerParams(
            dimension_semantics=("parallel",)),
    )(patches, wbd)

    # Free row-major reinterpretation: (B, PH, PW*Cout) -> (B, PH*PW, Cout).
    return out.reshape(B, PH * PW, Cout)


def tokenizer_reference(x_nchw, w_oikk, *, pk=3, ps=2, pp=1):
    """Plain-JAX reference (conv -> maxpool -> flatten -> transpose)."""
    conv = jax.lax.conv_general_dilated(
        x_nchw, w_oikk, window_strides=(1, 1), padding=((1, 1), (1, 1)),
        dimension_numbers=("NCHW", "OIHW", "NCHW"),
        precision=jax.lax.Precision.HIGHEST)
    pooled = jax.lax.reduce_window(
        conv, -jnp.inf, jax.lax.max,
        window_dimensions=(1, 1, pk, pk),
        window_strides=(1, 1, ps, ps),
        padding=((0, 0), (0, 0), (pp, pp), (pp, pp)))
    B, C, PH, PW = pooled.shape
    return jnp.transpose(pooled.reshape(B, C, PH * PW), (0, 2, 1))


if __name__ == "__main__":
    key = jax.random.PRNGKey(0)
    kx, kw = jax.random.split(key)

    B, Cin, H, W = 2, 4, 16, 16
    Cout, K = 32, 3

    x = jax.random.normal(kx, (B, Cin, H, W), dtype=jnp.float32)
    # Deterministic kaiming_normal_-style init: std = sqrt(2 / fan_in).
    fan_in = Cin * K * K
    w = jax.random.normal(kw, (Cout, Cin, K, K), dtype=jnp.float32) * jnp.sqrt(
        2.0 / fan_in)

    out = jax.block_until_ready(tokenizer_forward(x, w))
    assert out.shape == (B, 8 * 8, Cout), out.shape

    # Tight check: reference fed the same bf16-rounded operands (kernel uses
    # bf16 MXU operands with f32 accumulation, so only summation order differs).
    xb = x.astype(jnp.bfloat16).astype(jnp.float32)
    wb = w.astype(jnp.bfloat16).astype(jnp.float32)
    err_tight = float(jnp.max(jnp.abs(out - tokenizer_reference(xb, wb))))
    assert err_tight < 1e-3, f"tight max abs err {err_tight}"

    # Loose sanity check vs the full-f32 reference (bounds bf16 operand rounding).
    err_loose = float(jnp.max(jnp.abs(out - tokenizer_reference(x, w))))
    assert err_loose < 5e-2, f"loose max abs err {err_loose}"

    print("KERNEL_OK")
</pallas_src>

<mosaic_0001>
module attributes {stable_mosaic.version = 11 : i64} {
  func.func @_tokenizer_kernel(%arg0: i32, %arg1: memref<1x16x576xbf16, #tpu.memory_space<vmem>>, %arg2: memref<576x512xbf16, #tpu.memory_space<vmem>>, %arg3: memref<1x8x256xf32, #tpu.memory_space<vmem>>) attributes {dimension_semantics = [#tpu.dimension_semantics<parallel>], iteration_bounds = array<i64: 2>, scalar_prefetch = 0 : i64, scratch_operands = 0 : i64, tpu.core_type = #tpu.core_type<tc>, window_params = [{transform_indices = @transform_0, window_bounds = array<i64: 1, 16, 576>}, {pipeline_mode = #tpu.pipeline_mode<synchronous>, transform_indices = @transform_1, window_bounds = array<i64: 576, 512>}, {transform_indices = @transform_2, window_bounds = array<i64: 1, 8, 256>}]} {
    %c0 = arith.constant 0 : index
    %c0_0 = arith.constant 0 : index
    %c0_1 = arith.constant 0 : index
    %0 = vector.load %arg1[%c0, %c0_0, %c0_1] : memref<1x16x576xbf16, #tpu.memory_space<vmem>>, vector<1x16x576xbf16>
    %1 = vector.shape_cast %0 : vector<1x16x576xbf16> to vector<16x576xbf16>
    %c0_2 = arith.constant 0 : index
    %c0_3 = arith.constant 0 : index
    %2 = vector.load %arg2[%c0_2, %c0_3] : memref<576x512xbf16, #tpu.memory_space<vmem>>, vector<576x512xbf16>
    %cst = arith.constant dense<0.000000e+00> : vector<16x512xf32>
    %3 = tpu.matmul %1, %2, %cst {dimension_numbers = #tpu.dot_dimension_numbers<[1], [0], [0], [1], [0, 0, 1, 1], [], []>} : vector<16x576xbf16>, vector<576x512xbf16>, vector<16x512xf32> -> vector<16x512xf32>
    %4 = vector.shape_cast %3 : vector<16x512xf32> to vector<1x16x512xf32>
    %cst_4 = arith.constant 0xFF800000 : f32
    %5 = vector.broadcast %cst_4 : f32 to vector<1x1x512xf32>
    %6 = vector.extract_strided_slice %4 {offsets = [0, 1, 0], sizes = [1, 15, 512], strides = [1, 1, 1]} : vector<1x16x512xf32> to vector<1x15x512xf32>
    %7 = tpu.concatenate %6, %5 in 1 : vector<1x15x512xf32>, vector<1x1x512xf32> -> vector<1x16x512xf32>
    %8 = vector.extract_strided_slice %4 {offsets = [0, 0, 0], sizes = [1, 15, 512], strides = [1, 1, 1]} : vector<1x16x512xf32> to vector<1x15x512xf32>
    %9 = tpu.concatenate %5, %8 in 1 : vector<1x1x512xf32>, vector<1x15x512xf32> -> vector<1x16x512xf32>
    %10 = arith.maximumf %4, %7 : vector<1x16x512xf32>
    %11 = arith.maximumf %10, %9 : vector<1x16x512xf32>
    %12 = vector.extract_strided_slice %11 {offsets = [0, 0, 0], sizes = [1, 1, 512], strides = [1, 1, 1]} : vector<1x16x512xf32> to vector<1x1x512xf32>
    %13 = vector.extract_strided_slice %11 {offsets = [0, 2, 0], sizes = [1, 1, 512], strides = [1, 1, 1]} : vector<1x16x512xf32> to vector<1x1x512xf32>
    %14 = vector.extract_strided_slice %11 {offsets = [0, 4, 0], sizes = [1, 1, 512], strides = [1, 1, 1]} : vector<1x16x512xf32> to vector<1x1x512xf32>
    %15 = vector.extract_strided_slice %11 {offsets = [0, 6, 0], sizes = [1, 1, 512], strides = [1, 1, 1]} : vector<1x16x512xf32> to vector<1x1x512xf32>
    %16 = vector.extract_strided_slice %11 {offsets = [0, 8, 0], sizes = [1, 1, 512], strides = [1, 1, 1]} : vector<1x16x512xf32> to vector<1x1x512xf32>
    %17 = vector.extract_strided_slice %11 {offsets = [0, 10, 0], sizes = [1, 1, 512], strides = [1, 1, 1]} : vector<1x16x512xf32> to vector<1x1x512xf32>
    %18 = vector.extract_strided_slice %11 {offsets = [0, 12, 0], sizes = [1, 1, 512], strides = [1, 1, 1]} : vector<1x16x512xf32> to vector<1x1x512xf32>
    %19 = vector.extract_strided_slice %11 {offsets = [0, 14, 0], sizes = [1, 1, 512], strides = [1, 1, 1]} : vector<1x16x512xf32> to vector<1x1x512xf32>
    %20 = tpu.concatenate %12, %13, %14, %15, %16, %17, %18, %19 in 1 : vector<1x1x512xf32>, vector<1x1x512xf32>, vector<1x1x512xf32>, vector<1x1x512xf32>, vector<1x1x512xf32>, vector<1x1x512xf32>, vector<1x1x512xf32>, vector<1x1x512xf32> -> vector<1x8x512xf32>
    %cst_5 = arith.constant 0xFF800000 : f32
    %21 = vector.broadcast %cst_5 : f32 to vector<1x8x32xf32>
    %22 = vector.extract_strided_slice %20 {offsets = [0, 0, 0], sizes = [1, 8, 480], strides = [1, 1, 1]} : vector<1x8x512xf32> to vector<1x8x480xf32>
    %23 = tpu.concatenate %21, %22 in 2 : vector<1x8x32xf32>, vector<1x8x480xf32> -> vector<1x8x512xf32>
    %24 = vector.extract_strided_slice %20 {offsets = [0, 0, 32], sizes = [1, 8, 480], strides = [1, 1, 1]} : vector<1x8x512xf32> to vector<1x8x480xf32>
    %25 = tpu.concatenate %24, %21 in 2 : vector<1x8x480xf32>, vector<1x8x32xf32> -> vector<1x8x512xf32>
    %26 = arith.maximumf %20, %23 : vector<1x8x512xf32>
    %27 = arith.maximumf %26, %25 : vector<1x8x512xf32>
    %28 = vector.extract_strided_slice %27 {offsets = [0, 0, 0], sizes = [1, 8, 32], strides = [1, 1, 1]} : vector<1x8x512xf32> to vector<1x8x32xf32>
    %29 = vector.extract_strided_slice %27 {offsets = [0, 0, 64], sizes = [1, 8, 32], strides = [1, 1, 1]} : vector<1x8x512xf32> to vector<1x8x32xf32>
    %30 = vector.extract_strided_slice %27 {offsets = [0, 0, 128], sizes = [1, 8, 32], strides = [1, 1, 1]} : vector<1x8x512xf32> to vector<1x8x32xf32>
    %31 = vector.extract_strided_slice %27 {offsets = [0, 0, 192], sizes = [1, 8, 32], strides = [1, 1, 1]} : vector<1x8x512xf32> to vector<1x8x32xf32>
    %32 = vector.extract_strided_slice %27 {offsets = [0, 0, 256], sizes = [1, 8, 32], strides = [1, 1, 1]} : vector<1x8x512xf32> to vector<1x8x32xf32>
    %33 = vector.extract_strided_slice %27 {offsets = [0, 0, 320], sizes = [1, 8, 32], strides = [1, 1, 1]} : vector<1x8x512xf32> to vector<1x8x32xf32>
    %34 = vector.extract_strided_slice %27 {offsets = [0, 0, 384], sizes = [1, 8, 32], strides = [1, 1, 1]} : vector<1x8x512xf32> to vector<1x8x32xf32>
    %35 = vector.extract_strided_slice %27 {offsets = [0, 0, 448], sizes = [1, 8, 32], strides = [1, 1, 1]} : vector<1x8x512xf32> to vector<1x8x32xf32>
    %36 = tpu.concatenate %28, %29, %30, %31, %32, %33, %34, %35 in 2 : vector<1x8x32xf32>, vector<1x8x32xf32>, vector<1x8x32xf32>, vector<1x8x32xf32>, vector<1x8x32xf32>, vector<1x8x32xf32>, vector<1x8x32xf32>, vector<1x8x32xf32> -> vector<1x8x256xf32>
    %c0_6 = arith.constant 0 : index
    %c0_7 = arith.constant 0 : index
    %c0_8 = arith.constant 0 : index
    %37 = vector.load %arg3[%c0_6, %c0_7, %c0_8] : memref<1x8x256xf32, #tpu.memory_space<vmem>>, vector<1x8x256xf32>
    tpu.vector_store %arg3[%c0_6, %c0_7, %c0_8], %36 {strides = array<i32>} : memref<1x8x256xf32, #tpu.memory_space<vmem>>, vector<1x8x256xf32>,
    return
  }
  func.func @transform_0(%arg0: i32) -> (i32, i32, i32) {
    %c0_i32 = arith.constant 0 : i32
    %c0_i32_0 = arith.constant 0 : i32
    %c0_i32_1 = arith.constant 0 : i32
    return %arg0, %c0_i32, %c0_i32_0 : i32, i32, i32
  }
  func.func @transform_1(%arg0: i32) -> (i32, i32) {
    %c0_i32 = arith.constant 0 : i32
    %c0_i32_0 = arith.constant 0 : i32
    %c0_i32_1 = arith.constant 0 : i32
    return %c0_i32, %c0_i32_0 : i32, i32
  }
  func.func @transform_2(%arg0: i32) -> (i32, i32, i32) {
    %c0_i32 = arith.constant 0 : i32
    %c0_i32_0 = arith.constant 0 : i32
    %c0_i32_1 = arith.constant 0 : i32
    return %arg0, %c0_i32, %c0_i32_0 : i32, i32, i32
  }
}

</mosaic_0001>

<llo_original>
// kernel: tpu_custom_call.1
$region0: #{tpu_custom_call.1}
  #allocation0 [shape = 'u32[]', space=smem, size = 0x4, offset = 0x4, fixed_abs, tag = 'smem constant byte address 0x4 - core index']
  #allocation1 [shape = 'u32[144,128]{1,0:T(1,128)}', space=vmem, size = 0x12000, scoped, tag = 'internal scratch']
  %s0 = inlined_call_operand.hbm [shape: bf16[2,16,576], index: 0, kind: input, shape index: {}]
  %s1 = inlined_call_operand.hbm [shape: bf16[576,512], index: 1, kind: input, shape index: {}]
  %s2 = inlined_call_operand.hbm [shape: f32[2,8,256], index: 2, kind: output, shape index: {}]
  %s3 = sld [smem:[#allocation0]]
  $region49: #{tpu_custom_call.1} parent=0
    _
  %s5 = ssub.s32 1, %s3
  %s6 = scalar_select 0, %s5, %s3
  $region1: #{tpu_custom_call.1} parent=0
    #allocation2 [shape = 'u8[40960]{0}', space=vmem, size = 0xa000, scoped, tag = 'input window, operand 0']
    #allocation3 [shape = 's32[2]{0}', space=sflag, size = 0x8, scoped, tag = 'scoped memory for tpu_custom_call.1']
    #allocation4 [shape = 's32[2]{0}', space=sflag, size = 0x8, scoped, tag = 'scoped memory for tpu_custom_call.1']
    #allocation5 [shape = 'u8[589824]{0}', space=vmem, size = 0x90000, scoped, tag = 'input window, operand 1, single buffered']
    #allocation6 [shape = 's32[1]{0}', space=sflag, size = 0x4, scoped, tag = 'scoped memory for tpu_custom_call.1']
    #allocation7 [shape = 'u8[16384]{0}', space=vmem, size = 0x4000, scoped, tag = 'output window, operand 0']
    %7 = vsyncpa [#allocation3], 0
    %s8 = scalar_lea.sflag [#allocation3], 1
    %9 = vsyncpa %s8, 0
    %10 = vsyncpa [#allocation6], 0
    %11 = vsyncpa [#allocation4], 0
    %s12 = scalar_lea.sflag [#allocation4], 1
    %13 = vsyncpa %s12, 0
    loop: start=0, step=1, limit=4
    $region2: #{tpu_custom_call.1} parent=1 // loop_pre_header
      _
    $region3: #{tpu_custom_call.1} parent=1 // loop_header
      %s15 = sphi 0, %s19
      %p16 = scmp.ge.s32.totalorder %s15, 4
      %s25 = sphi 0, %s27
      %s28 = sphi 0, %s25
      %s29 = sphi 0, %s28
      %s45 = sphi 0, %s29
      %s49 = sphi 0, %s49
      %s51 = sphi 0, %s49
      %s52 = sphi 0, %s51
      %s66 = sphi 0, %s52
      %s72 = sphi 0, %s74
      %s75 = sphi 0, %s72
      %s76 = sphi 0, %s75
      %s92 = sphi 0, %s76
    $region4: #{tpu_custom_call.1} parent=1 // loop_header_branch
      %18 = sbr.rel (%p16) target = $region8
    $region5: #{tpu_custom_call.1} parent=1 // loop_body
      %s20 = ssub.s32 %s15, 1
      %s21 = ssub.s32 %s15, 2
      %s22 = sadd.s32 %s15, 1
      %s23 = ssub.s32 %s15, %s22
      %p24 = scmp.eq.s32.totalorder %s23, 0
      %s26 = sadd.s32 %s25, 1
      %s27 = scalar_select %p24, %s25, %s26
      %p30 = pneg %p24
      %p31 = scmp.eq.s32.totalorder %s15, 1
      %p32 = por %p30, %p31
      %p33 = scmp.ne.s32.totalorder %s25, %s28
      %p34 = scmp.eq.s32.totalorder %s15, 0
      %p35 = por %p33, %p34
      %p36 = scmp.ne.s32.totalorder %s25, %s28
      %p37 = scmp.eq.s32.totalorder %s20, 1
      %p38 = por %p36, %p37
      %p39 = scmp.ne.s32.totalorder %s28, %s29
      %p40 = scmp.eq.s32.totalorder %s20, 0
      %p41 = por %p39, %p40
      %p42 = scmp.ne.s32.totalorder %s28, %s29
      %p43 = scmp.eq.s32.totalorder %s21, 1
      %p44 = por %p42, %p43
      %p46 = scmp.ne.s32.totalorder %s29, %s45
      %p47 = scmp.eq.s32.totalorder %s21, 0
      %p48 = por %p46, %p47
      %s50 = sadd.s32 %s49, 1
      %p53 = scmp.eq.s32.totalorder %s15, 1
      %p54 = scmp.ne.s32.totalorder %s49, %s51
      %p55 = scmp.eq.s32.totalorder %s15, 0
      %p56 = por %p54, %p55
      %p57 = scmp.ne.s32.totalorder %s49, %s51
      %p58 = scmp.eq.s32.totalorder %s20, 1
      %p59 = por %p57, %p58
      %p60 = scmp.ne.s32.totalorder %s51, %s52
      %p61 = scmp.eq.s32.totalorder %s20, 0
      %p62 = por %p60, %p61
      %p63 = scmp.ne.s32.totalorder %s51, %s52
      %p64 = scmp.eq.s32.totalorder %s21, 1
      %p65 = por %p63, %p64
      %p67 = scmp.ne.s32.totalorder %s52, %s66
      %p68 = scmp.eq.s32.totalorder %s21, 0
      %p69 = por %p67, %p68
      %s70 = ssub.s32 %s15, %s22
      %p71 = scmp.eq.s32.totalorder %s70, 0
      %s73 = sadd.s32 %s72, 1
      %s74 = scalar_select %p71, %s72, %s73
      %p77 = pneg %p71
      %p78 = scmp.eq.s32.totalorder %s15, 1
      %p79 = por %p77, %p78
      %p80 = scmp.ne.s32.totalorder %s72, %s75
      %p81 = scmp.eq.s32.totalorder %s15, 0
      %p82 = por %p80, %p81
      %p83 = scmp.ne.s32.totalorder %s72, %s75
      %p84 = scmp.eq.s32.totalorder %s20, 1
      %p85 = por %p83, %p84
      %p86 = scmp.ne.s32.totalorder %s75, %s76
      %p87 = scmp.eq.s32.totalorder %s20, 0
      %p88 = por %p86, %p87
      %p89 = scmp.ne.s32.totalorder %s75, %s76
      %p90 = scmp.eq.s32.totalorder %s21, 1
      %p91 = por %p89, %p90
      %p93 = scmp.ne.s32.totalorder %s76, %s92
      %p94 = scmp.eq.s32.totalorder %s21, 0
      %p95 = por %p93, %p94
      %p96 = scmp.le.s32.totalorder 1, %s15
      %p97 = scmp.lt.s32.totalorder %s15, 3
      %p98 = pnand %p96, %p97
      %p99 = pneg %p98
      // Predicated region
      $region9: #{tpu_custom_call.1} parent=5 // pred_check
        _
      $region10: #{tpu_custom_call.1} parent=5 // pred_check_branch
        %101 = sbr.rel (%p98) target = $region12
      $region11: #{tpu_custom_call.1} parent=5 // pred_region
        %s102 = ssub.s32 %s15, 1
        // Predicated region
        $region13: #{tpu_custom_call.1} parent=11 // pred_check
          %p103 = pneg %p62
        $region14: #{tpu_custom_call.1} parent=11 // pred_check_branch
          %105 = sbr.rel (%p103) target = $region16
        $region15: #{tpu_custom_call.1} parent=11 // pred_region
          %s107 = ssub.s32 18432, 18432
          %108 = vsyncadd [#allocation6], %s107
          %s109 = sshll.u32 [#allocation5], 4
          %s110 = int_to_ptr.vmem [resolvable:$true] %s109
          %115 = dma.hbm_to_vmem [thread:$0]  %s1, 18432, %s110, [#allocation6], 256, 256, 16
        $region16: #{tpu_custom_call.1} parent=11 // pred_fallthru
          _
      $region12: #{tpu_custom_call.1} parent=5 // pred_fallthru
        _
      %p116 = scmp.lt.s32.totalorder %s15, 2
      // Predicated region
      $region17: #{tpu_custom_call.1} parent=5 // pred_check
        %p117 = pneg %p116
      $region18: #{tpu_custom_call.1} parent=5 // pred_check_branch
        %119 = sbr.rel (%p117) target = $region20
      $region19: #{tpu_custom_call.1} parent=5 // pred_region
        // Predicated region
        $region21: #{tpu_custom_call.1} parent=19 // pred_check
          %p120 = pneg %p35
        $region22: #{tpu_custom_call.1} parent=19 // pred_check_branch
          %122 = sbr.rel (%p120) target = $region24
        $region23: #{tpu_custom_call.1} parent=19 // pred_region
          %s123 = sand.u32 %s25, 1
          %s124 = scalar_lea.sflag [#allocation3], %s123
          %s125 = sand.u32 %s25, 1
          %s126 = smul.addr %s125, 40
          %s127 = scalar_lea.vmem [#allocation2], %s126
          %s129 = ssub.s32 640, 640
          %130 = vsyncadd %s124, %s129
          %s131 = smul.addr %s15, 10
          %s132 = smul.addr %s131, 64
          %s133 = scalar_lea.hbm %s0, %s132
          %s134 = sshll.u32 %s127, 4
          %s135 = int_to_ptr.vmem [resolvable:$true] %s134
          %140 = dma.hbm_to_vmem [thread:$0]  %s133, 640, %s135, %s124, 320, 320, 20
        $region24: #{tpu_custom_call.1} parent=19 // pred_fallthru
          _
      $region20: #{tpu_custom_call.1} parent=5 // pred_fallthru
        _
      %p141 = scmp.le.s32.totalorder 1, %s15
      %p142 = scmp.lt.s32.totalorder %s15, 3
      %p143 = pnand %p141, %p142
      %p144 = pneg %p143
      // Predicated region
      $region25: #{tpu_custom_call.1} parent=5 // pred_check
        _
      $region26: #{tpu_custom_call.1} parent=5 // pred_check_branch
        %146 = sbr.rel (%p143) target = $region28
      $region27: #{tpu_custom_call.1} parent=5 // pred_region
        %s147 = ssub.s32 %s15, 1
        %s148 = sand.u32 %s28, 1
        %s149 = scalar_lea.sflag [#allocation3], %s148
        %s150 = sand.u32 %s28, 1
        %s151 = smul.addr %s150, 40
        %s152 = scalar_lea.vmem [#allocation2], %s151
        // Predicated region
        $region29: #{tpu_custom_call.1} parent=27 // pred_check
          %p153 = pneg %p41
        $region30: #{tpu_custom_call.1} parent=27 // pred_check_branch
          %155 = sbr.rel (%p153) target = $region32
        $region31: #{tpu_custom_call.1} parent=27 // pred_region
          %156 = dma.done %s149, 640
        $region32: #{tpu_custom_call.1} parent=27 // pred_fallthru
          _
        // Predicated region
        $region33: #{tpu_custom_call.1} parent=27 // pred_check
          %p157 = pneg %p62
        $region34: #{tpu_custom_call.1} parent=27 // pred_check_branch
          %159 = sbr.rel (%p157) target = $region36
        $region35: #{tpu_custom_call.1} parent=27 // pred_region
          %160 = dma.done [#allocation6], 18432
        $region36: #{tpu_custom_call.1} parent=27 // pred_fallthru
          _
        %s161 = sand.u32 %s28, 1
        %s162 = scalar_lea.sflag [#allocation3], %s161
        %s163 = sand.u32 %s28, 1
        %s164 = smul.addr %s163, 40
        %s165 = scalar_lea.vmem [#allocation2], %s164
        %p166 = pneg %p41
        %p167 = pneg %p38
        %p168 = pneg %p62
        %p169 = pneg %p59
        %p170 = pneg %p88
        %p171 = pneg %p85
        %s172 = sand.u32 %s75, 1
        %s173 = scalar_lea.sflag [#allocation4], %s172
        %s174 = sand.u32 %s75, 1
        %s175 = smul.addr %s174, 16
        %s176 = scalar_lea.vmem [#allocation7], %s175
        %v178 = vld [vmem:[%s152] sm:$0xff]
        %v179 = vld [vmem:[%s152 + $0x8] sm:$0xff]
        %v180 = vld [vmem:[%s152 + $0x10] sm:$0xf]
        %v181 = vld [vmem:[%s152 + $0x14] sm:$0xff]
        %v182 = vld [vmem:[%s152 + $0x1c] sm:$0xff]
        %v183 = vld [vmem:[%s152 + $0x24] sm:$0xf]
        %v184 = vld [vmem:[#allocation5] sm:$0xff]
        %v185 = vld [vmem:[#allocation5 + $0x8] sm:$0xff]
        %v186 = vld [vmem:[#allocation5 + $0x10] sm:$0xff]
        %v187 = vld [vmem:[#allocation5 + $0x18] sm:$0xff]
        %v188 = vld [vmem:[#allocation5 + $0x20] sm:$0xff]
        %v189 = vld [vmem:[#allocation5 + $0x28] sm:$0xff]
        %v190 = vld [vmem:[#allocation5 + $0x30] sm:$0xff]
        %v191 = vld [vmem:[#allocation5 + $0x38] sm:$0xff]
        %v192 = vld [vmem:[#allocation5 + $0x40] sm:$0xff]
        %v193 = vld [vmem:[#allocation5 + $0x48] sm:$0xff]
        %v194 = vld [vmem:[#allocation5 + $0x50] sm:$0xff]
        %v195 = vld [vmem:[#allocation5 + $0x58] sm:$0xff]
        %v196 = vld [vmem:[#allocation5 + $0x60] sm:$0xff]
        %v197 = vld [vmem:[#allocation5 + $0x68] sm:$0xff]
        %v198 = vld [vmem:[#allocation5 + $0x70] sm:$0xff]
        %v199 = vld [vmem:[#allocation5 + $0x78] sm:$0xff]
        %v200 = vld [vmem:[#allocation5 + $0x80] sm:$0xff]
        %v201 = vld [vmem:[#allocation5 + $0x88] sm:$0xff]
        %v202 = vld [vmem:[#allocation5 + $0x90] sm:$0xff]
        %v203 = vld [vmem:[#allocation5 + $0x98] sm:$0xff]
        %v204 = vld [vmem:[#allocation5 + $0xa0] sm:$0xff]
        %v205 = vld [vmem:[#allocation5 + $0xa8] sm:$0xff]
        %v206 = vld [vmem:[#allocation5 + $0xb0] sm:$0xff]
        %v207 = vld [vmem:[#allocation5 + $0xb8] sm:$0xff]
        %v208 = vld [vmem:[#allocation5 + $0xc0] sm:$0xff]
        %v209 = vld [vmem:[#allocation5 + $0xc8] sm:$0xff]
        %v210 = vld [vmem:[#allocation5 + $0xd0] sm:$0xff]
        %v211 = vld [vmem:[#allocation5 + $0xd8] sm:$0xff]
        %v212 = vld [vmem:[#allocation5 + $0xe0] sm:$0xff]
        %v213 = vld [vmem:[#allocation5 + $0xe8] sm:$0xff]
        %v214 = vld [vmem:[#allocation5 + $0xf0] sm:$0xff]
        %v215 = vld [vmem:[#allocation5 + $0xf8] sm:$0xff]
        %v216 = vld [vmem:[#allocation5 + $0x100] sm:$0xff]
        %v217 = vld [vmem:[#allocation5 + $0x108] sm:$0xff]
        %v218 = vld [vmem:[#allocation5 + $0x110] sm:$0xff]
        %v219 = vld [vmem:[#allocation5 + $0x118] sm:$0xff]
        %v220 = vld [vmem:[#allocation5 + $0x120] sm:$0xff]
        %v221 = vld [vmem:[#allocation5 + $0x128] sm:$0xff]
        %v222 = vld [vmem:[#allocation5 + $0x130] sm:$0xff]
        %v223 = vld [vmem:[#allocation5 + $0x138] sm:$0xff]
        %v224 = vld [vmem:[#allocation5 + $0x140] sm:$0xff]
        %v225 = vld [vmem:[#allocation5 + $0x148] sm:$0xff]
        %v226 = vld [vmem:[#allocation5 + $0x150] sm:$0xff]
        %v227 = vld [vmem:[#allocation5 + $0x158] sm:$0xff]
        %v228 = vld [vmem:[#allocation5 + $0x160] sm:$0xff]
        %v229 = vld [vmem:[#allocation5 + $0x168] sm:$0xff]
        %v230 = vld [vmem:[#allocation5 + $0x170] sm:$0xff]
        %v231 = vld [vmem:[#allocation5 + $0x178] sm:$0xff]
        %v232 = vld [vmem:[#allocation5 + $0x180] sm:$0xff]
        %v233 = vld [vmem:[#allocation5 + $0x188] sm:$0xff]
        %v234 = vld [vmem:[#allocation5 + $0x190] sm:$0xff]
        %v235 = vld [vmem:[#allocation5 + $0x198] sm:$0xff]
        %v236 = vld [vmem:[#allocation5 + $0x1a0] sm:$0xff]
        %v237 = vld [vmem:[#allocation5 + $0x1a8] sm:$0xff]
        %v238 = vld [vmem:[#allocation5 + $0x1b0] sm:$0xff]
        %v239 = vld [vmem:[#allocation5 + $0x1b8] sm:$0xff]
        %v240 = vld [vmem:[#allocation5 + $0x1c0] sm:$0xff]
        %v241 = vld [vmem:[#allocation5 + $0x1c8] sm:$0xff]
        %v242 = vld [vmem:[#allocation5 + $0x1d0] sm:$0xff]
        %v243 = vld [vmem:[#allocation5 + $0x1d8] sm:$0xff]
        %v244 = vld [vmem:[#allocation5 + $0x1e0] sm:$0xff]
        %v245 = vld [vmem:[#allocation5 + $0x1e8] sm:$0xff]
        %v246 = vld [vmem:[#allocation5 + $0x1f0] sm:$0xff]
        %v247 = vld [vmem:[#allocation5 + $0x1f8] sm:$0xff]
        %v248 = vld [vmem:[#allocation5 + $0x200] sm:$0xff]
        %v249 = vld [vmem:[#allocation5 + $0x208] sm:$0xff]
        %v250 = vld [vmem:[#allocation5 + $0x210] sm:$0xff]
        %v251 = vld [vmem:[#allocation5 + $0x218] sm:$0xff]
        %v252 = vld [vmem:[#allocation5 + $0x220] sm:$0xff]
        %v253 = vld [vmem:[#allocation5 + $0x228] sm:$0xff]
        %v254 = vld [vmem:[#allocation5 + $0x230] sm:$0xff]
        %v255 = vld [vmem:[#allocation5 + $0x238] sm:$0xff]
        %v256 = vld [vmem:[#allocation5 + $0x240] sm:$0xff]
        %v257 = vld [vmem:[#allocation5 + $0x248] sm:$0xff]
        %v258 = vld [vmem:[#allocation5 + $0x250] sm:$0xff]
        %v259 = vld [vmem:[#allocation5 + $0x258] sm:$0xff]
        %v260 = vld [vmem:[#allocation5 + $0x260] sm:$0xff]
        %v261 = vld [vmem:[#allocation5 + $0x268] sm:$0xff]
        %v262 = vld [vmem:[#allocation5 + $0x270] sm:$0xff]
        %v263 = vld [vmem:[#allocation5 + $0x278] sm:$0xff]
        %v264 = vld [vmem:[#allocation5 + $0x280] sm:$0xff]
        %v265 = vld [vmem:[#allocation5 + $0x288] sm:$0xff]
        %v266 = vld [vmem:[#allocation5 + $0x290] sm:$0xff]
        %v267 = vld [vmem:[#allocation5 + $0x298] sm:$0xff]
        %v268 = vld [vmem:[#allocation5 + $0x2a0] sm:$0xff]
        %v269 = vld [vmem:[#allocation5 + $0x2a8] sm:$0xff]
        %v270 = vld [vmem:[#allocation5 + $0x2b0] sm:$0xff]
        %v271 = vld [vmem:[#allocation5 + $0x2b8] sm:$0xff]
        %v272 = vld [vmem:[#allocation5 + $0x2c0] sm:$0xff]
        %v273 = vld [vmem:[#allocation5 + $0x2c8] sm:$0xff]
        %v274 = vld [vmem:[#allocation5 + $0x2d0] sm:$0xff]
        %v275 = vld [vmem:[#allocation5 + $0x2d8] sm:$0xff]
        %v276 = vld [vmem:[#allocation5 + $0x2e0] sm:$0xff]
        %v277 = vld [vmem:[#allocation5 + $0x2e8] sm:$0xff]
        %v278 = vld [vmem:[#allocation5 + $0x2f0] sm:$0xff]
        %v279 = vld [vmem:[#allocation5 + $0x2f8] sm:$0xff]
        %v280 = vld [vmem:[#allocation5 + $0x300] sm:$0xff]
        %v281 = vld [vmem:[#allocation5 + $0x308] sm:$0xff]
        %v282 = vld [vmem:[#allocation5 + $0x310] sm:$0xff]
        %v283 = vld [vmem:[#allocation5 + $0x318] sm:$0xff]
        %v284 = vld [vmem:[#allocation5 + $0x320] sm:$0xff]
        %v285 = vld [vmem:[#allocation5 + $0x328] sm:$0xff]
        %v286 = vld [vmem:[#allocation5 + $0x330] sm:$0xff]
        %v287 = vld [vmem:[#allocation5 + $0x338] sm:$0xff]
        %v288 = vld [vmem:[#allocation5 + $0x340] sm:$0xff]
        %v289 = vld [vmem:[#allocation5 + $0x348] sm:$0xff]
        %v290 = vld [vmem:[#allocation5 + $0x350] sm:$0xff]
        %v291 = vld [vmem:[#allocation5 + $0x358] sm:$0xff]
        %v292 = vld [vmem:[#allocation5 + $0x360] sm:$0xff]
        %v293 = vld [vmem:[#allocation5 + $0x368] sm:$0xff]
        %v294 = vld [vmem:[#allocation5 + $0x370] sm:$0xff]
        %v295 = vld [vmem:[#allocation5 + $0x378] sm:$0xff]
        %v296 = vld [vmem:[#allocation5 + $0x380] sm:$0xff]
        %v297 = vld [vmem:[#allocation5 + $0x388] sm:$0xff]
        %v298 = vld [vmem:[#allocation5 + $0x390] sm:$0xff]
        %v299 = vld [vmem:[#allocation5 + $0x398] sm:$0xff]
        %v300 = vld [vmem:[#allocation5 + $0x3a0] sm:$0xff]
        %v301 = vld [vmem:[#allocation5 + $0x3a8] sm:$0xff]
        %v302 = vld [vmem:[#allocation5 + $0x3b0] sm:$0xff]
        %v303 = vld [vmem:[#allocation5 + $0x3b8] sm:$0xff]
        %v304 = vld [vmem:[#allocation5 + $0x3c0] sm:$0xff]
        %v305 = vld [vmem:[#allocation5 + $0x3c8] sm:$0xff]
        %v306 = vld [vmem:[#allocation5 + $0x3d0] sm:$0xff]
        %v307 = vld [vmem:[#allocation5 + $0x3d8] sm:$0xff]
        %v308 = vld [vmem:[#allocation5 + $0x3e0] sm:$0xff]
        %v309 = vld [vmem:[#allocation5 + $0x3e8] sm:$0xff]
        %v310 = vld [vmem:[#allocation5 + $0x3f0] sm:$0xff]
        %v311 = vld [vmem:[#allocation5 + $0x3f8] sm:$0xff]
        %v312 = vld [vmem:[#allocation5 + $0x400] sm:$0xff]
        %v313 = vld [vmem:[#allocation5 + $0x408] sm:$0xff]
        %v314 = vld [vmem:[#allocation5 + $0x410] sm:$0xff]
        %v315 = vld [vmem:[#allocation5 + $0x418] sm:$0xff]
        %v316 = vld [vmem:[#allocation5 + $0x420] sm:$0xff]
        %v317 = vld [vmem:[#allocation5 + $0x428] sm:$0xff]
        %v318 = vld [vmem:[#allocation5 + $0x430] sm:$0xff]
        %v319 = vld [vmem:[#allocation5 + $0x438] sm:$0xff]
        %v320 = vld [vmem:[#allocation5 + $0x440] sm:$0xff]
        %v321 = vld [vmem:[#allocation5 + $0x448] sm:$0xff]
        %v322 = vld [vmem:[#allocation5 + $0x450] sm:$0xff]
        %v323 = vld [vmem:[#allocation5 + $0x458] sm:$0xff]
        %v324 = vld [vmem:[#allocation5 + $0x460] sm:$0xff]
        %v325 = vld [vmem:[#allocation5 + $0x468] sm:$0xff]
        %v326 = vld [vmem:[#allocation5 + $0x470] sm:$0xff]
        %v327 = vld [vmem:[#allocation5 + $0x478] sm:$0xff]
        %v334 = vunpack.c.l.b16 %v178
        %v335 = vunpack.c.h.b16 %v178
        %v336 = vunpack.c.l.b16 %v179
        %v337 = vunpack.c.h.b16 %v179
        %v338 = vunpack.c.l.b16 %v180
        %v339 = vunpack.c.l.b16 %v181
        %v340 = vunpack.c.h.b16 %v181
        %v341 = vunpack.c.l.b16 %v182
        %v342 = vunpack.c.h.b16 %v182
        %v343 = vunpack.c.l.b16 %v183
        %v344 = vpack.c.b16 %v339, %v334
        %v345 = vpack.c.b16 %v340, %v335
        %v346 = vpack.c.b16 %v341, %v336
        %v347 = vpack.c.b16 %v342, %v337
        %v348 = vpack.c.b16 %v343, %v338
        %v497 = vunpack.c.l.b16 %v184
        %v498 = vunpack.c.h.b16 %v184
        %v499 = vunpack.c.l.b16 %v185
        %v500 = vunpack.c.h.b16 %v185
        %v501 = vunpack.c.l.b16 %v186
        %v502 = vunpack.c.h.b16 %v186
        %v503 = vunpack.c.l.b16 %v187
        %v504 = vunpack.c.h.b16 %v187
        %v505 = vunpack.c.l.b16 %v188
        %v506 = vunpack.c.h.b16 %v188
        %v507 = vunpack.c.l.b16 %v189
        %v508 = vunpack.c.h.b16 %v189
        %v509 = vunpack.c.l.b16 %v190
        %v510 = vunpack.c.h.b16 %v190
        %v511 = vunpack.c.l.b16 %v191
        %v512 = vunpack.c.h.b16 %v191
        %v513 = vunpack.c.l.b16 %v192
        %v514 = vunpack.c.h.b16 %v192
        %v515 = vunpack.c.l.b16 %v193
        %v516 = vunpack.c.h.b16 %v193
        %v517 = vunpack.c.l.b16 %v194
        %v518 = vunpack.c.h.b16 %v194
        %v519 = vunpack.c.l.b16 %v195
        %v520 = vunpack.c.h.b16 %v195
        %v521 = vunpack.c.l.b16 %v196
        %v522 = vunpack.c.h.b16 %v196
        %v523 = vunpack.c.l.b16 %v197
        %v524 = vunpack.c.h.b16 %v197
        %v525 = vunpack.c.l.b16 %v198
        %v526 = vunpack.c.h.b16 %v198
        %v527 = vunpack.c.l.b16 %v199
        %v528 = vunpack.c.h.b16 %v199
        %v529 = vunpack.c.l.b16 %v200
        %v530 = vunpack.c.h.b16 %v200
        %v531 = vunpack.c.l.b16 %v201
        %v532 = vunpack.c.h.b16 %v201
        %v533 = vunpack.c.l.b16 %v202
        %v534 = vunpack.c.h.b16 %v202
        %v535 = vunpack.c.l.b16 %v203
        %v536 = vunpack.c.h.b16 %v203
        %v537 = vunpack.c.l.b16 %v204
        %v538 = vunpack.c.h.b16 %v204
        %v539 = vunpack.c.l.b16 %v205
        %v540 = vunpack.c.h.b16 %v205
        %v541 = vunpack.c.l.b16 %v206
        %v542 = vunpack.c.h.b16 %v206
        %v543 = vunpack.c.l.b16 %v207
        %v544 = vunpack.c.h.b16 %v207
        %v545 = vunpack.c.l.b16 %v208
        %v546 = vunpack.c.h.b16 %v208
        %v547 = vunpack.c.l.b16 %v209
        %v548 = vunpack.c.h.b16 %v209
        %v549 = vunpack.c.l.b16 %v210
        %v550 = vunpack.c.h.b16 %v210
        %v551 = vunpack.c.l.b16 %v211
        %v552 = vunpack.c.h.b16 %v211
        %v553 = vunpack.c.l.b16 %v212
        %v554 = vunpack.c.h.b16 %v212
        %v555 = vunpack.c.l.b16 %v213
        %v556 = vunpack.c.h.b16 %v213
        %v557 = vunpack.c.l.b16 %v214
        %v558 = vunpack.c.h.b16 %v214
        %v559 = vunpack.c.l.b16 %v215
        %v560 = vunpack.c.h.b16 %v215
        %v561 = vunpack.c.l.b16 %v216
        %v562 = vunpack.c.h.b16 %v216
        %v563 = vunpack.c.l.b16 %v217
        %v564 = vunpack.c.h.b16 %v217
        %v565 = vunpack.c.l.b16 %v218
        %v566 = vunpack.c.h.b16 %v218
        %v567 = vunpack.c.l.b16 %v219
        %v568 = vunpack.c.h.b16 %v219
        %v569 = vunpack.c.l.b16 %v220
        %v570 = vunpack.c.h.b16 %v220
        %v571 = vunpack.c.l.b16 %v221
        %v572 = vunpack.c.h.b16 %v221
        %v573 = vunpack.c.l.b16 %v222
        %v574 = vunpack.c.h.b16 %v222
        %v575 = vunpack.c.l.b16 %v223
        %v576 = vunpack.c.h.b16 %v223
        %v577 = vunpack.c.l.b16 %v224
        %v578 = vunpack.c.h.b16 %v224
        %v579 = vunpack.c.l.b16 %v225
        %v580 = vunpack.c.h.b16 %v225
        %v581 = vunpack.c.l.b16 %v226
        %v582 = vunpack.c.h.b16 %v226
        %v583 = vunpack.c.l.b16 %v227
        %v584 = vunpack.c.h.b16 %v227
        %v585 = vunpack.c.l.b16 %v228
        %v586 = vunpack.c.h.b16 %v228
        %v587 = vunpack.c.l.b16 %v229
        %v588 = vunpack.c.h.b16 %v229
        %v589 = vunpack.c.l.b16 %v230
        %v590 = vunpack.c.h.b16 %v230
        %v591 = vunpack.c.l.b16 %v231
        %v592 = vunpack.c.h.b16 %v231
        %v593 = vunpack.c.l.b16 %v232
        %v594 = vunpack.c.h.b16 %v232
        %v595 = vunpack.c.l.b16 %v233
        %v596 = vunpack.c.h.b16 %v233
        %v597 = vunpack.c.l.b16 %v234
        %v598 = vunpack.c.h.b16 %v234
        %v599 = vunpack.c.l.b16 %v235
        %v600 = vunpack.c.h.b16 %v235
        %v601 = vunpack.c.l.b16 %v236
        %v602 = vunpack.c.h.b16 %v236
        %v603 = vunpack.c.l.b16 %v237
        %v604 = vunpack.c.h.b16 %v237
        %v605 = vunpack.c.l.b16 %v238
        %v606 = vunpack.c.h.b16 %v238
        %v607 = vunpack.c.l.b16 %v239
        %v608 = vunpack.c.h.b16 %v239
        %v609 = vunpack.c.l.b16 %v240
        %v610 = vunpack.c.h.b16 %v240
        %v611 = vunpack.c.l.b16 %v241
        %v612 = vunpack.c.h.b16 %v241
        %v613 = vunpack.c.l.b16 %v242
        %v614 = vunpack.c.h.b16 %v242
        %v615 = vunpack.c.l.b16 %v243
        %v616 = vunpack.c.h.b16 %v243
        %v617 = vunpack.c.l.b16 %v244
        %v618 = vunpack.c.h.b16 %v244
        %v619 = vunpack.c.l.b16 %v245
        %v620 = vunpack.c.h.b16 %v245
        %v621 = vunpack.c.l.b16 %v246
        %v622 = vunpack.c.h.b16 %v246
        %v623 = vunpack.c.l.b16 %v247
        %v624 = vunpack.c.h.b16 %v247
        %v625 = vunpack.c.l.b16 %v248
        %v626 = vunpack.c.h.b16 %v248
        %v627 = vunpack.c.l.b16 %v249
        %v628 = vunpack.c.h.b16 %v249
        %v629 = vunpack.c.l.b16 %v250
        %v630 = vunpack.c.h.b16 %v250
        %v631 = vunpack.c.l.b16 %v251
        %v632 = vunpack.c.h.b16 %v251
        %v633 = vunpack.c.l.b16 %v252
        %v634 = vunpack.c.h.b16 %v252
        %v635 = vunpack.c.l.b16 %v253
        %v636 = vunpack.c.h.b16 %v253
        %v637 = vunpack.c.l.b16 %v254
        %v638 = vunpack.c.h.b16 %v254
        %v639 = vunpack.c.l.b16 %v255
        %v640 = vunpack.c.h.b16 %v255
        %v641 = vunpack.c.l.b16 %v256
        %v642 = vunpack.c.h.b16 %v256
        %v643 = vunpack.c.l.b16 %v257
        %v644 = vunpack.c.h.b16 %v257
        %v645 = vunpack.c.l.b16 %v258
        %v646 = vunpack.c.h.b16 %v258
        %v647 = vunpack.c.l.b16 %v259
        %v648 = vunpack.c.h.b16 %v259
        %v649 = vunpack.c.l.b16 %v260
        %v650 = vunpack.c.h.b16 %v260
        %v651 = vunpack.c.l.b16 %v261
        %v652 = vunpack.c.h.b16 %v261
        %v653 = vunpack.c.l.b16 %v262
        %v654 = vunpack.c.h.b16 %v262
        %v655 = vunpack.c.l.b16 %v263
        %v656 = vunpack.c.h.b16 %v263
        %v657 = vunpack.c.l.b16 %v264
        %v658 = vunpack.c.h.b16 %v264
        %v659 = vunpack.c.l.b16 %v265
        %v660 = vunpack.c.h.b16 %v265
        %v661 = vunpack.c.l.b16 %v266
        %v662 = vunpack.c.h.b16 %v266
        %v663 = vunpack.c.l.b16 %v267
        %v664 = vunpack.c.h.b16 %v267
        %v665 = vunpack.c.l.b16 %v268
        %v666 = vunpack.c.h.b16 %v268
        %v667 = vunpack.c.l.b16 %v269
        %v668 = vunpack.c.h.b16 %v269
        %v669 = vunpack.c.l.b16 %v270
        %v670 = vunpack.c.h.b16 %v270
        %v671 = vunpack.c.l.b16 %v271
        %v672 = vunpack.c.h.b16 %v271
        %v673 = vunpack.c.l.b16 %v272
        %v674 = vunpack.c.h.b16 %v272
        %v675 = vunpack.c.l.b16 %v273
        %v676 = vunpack.c.h.b16 %v273
        %v677 = vunpack.c.l.b16 %v274
        %v678 = vunpack.c.h.b16 %v274
        %v679 = vunpack.c.l.b16 %v275
        %v680 = vunpack.c.h.b16 %v275
        %v681 = vunpack.c.l.b16 %v276
        %v682 = vunpack.c.h.b16 %v276
        %v683 = vunpack.c.l.b16 %v277
        %v684 = vunpack.c.h.b16 %v277
        %v685 = vunpack.c.l.b16 %v278
        %v686 = vunpack.c.h.b16 %v278
        %v687 = vunpack.c.l.b16 %v279
        %v688 = vunpack.c.h.b16 %v279
        %v689 = vunpack.c.l.b16 %v280
        %v690 = vunpack.c.h.b16 %v280
        %v691 = vunpack.c.l.b16 %v281
        %v692 = vunpack.c.h.b16 %v281
        %v693 = vunpack.c.l.b16 %v282
        %v694 = vunpack.c.h.b16 %v282
        %v695 = vunpack.c.l.b16 %v283
        %v696 = vunpack.c.h.b16 %v283
        %v697 = vunpack.c.l.b16 %v284
        %v698 = vunpack.c.h.b16 %v284
        %v699 = vunpack.c.l.b16 %v285
        %v700 = vunpack.c.h.b16 %v285
        %v701 = vunpack.c.l.b16 %v286
        %v702 = vunpack.c.h.b16 %v286
        %v703 = vunpack.c.l.b16 %v287
        %v704 = vunpack.c.h.b16 %v287
        %v705 = vunpack.c.l.b16 %v288
        %v706 = vunpack.c.h.b16 %v288
        %v707 = vunpack.c.l.b16 %v289
        %v708 = vunpack.c.h.b16 %v289
        %v709 = vunpack.c.l.b16 %v290
        %v710 = vunpack.c.h.b16 %v290
        %v711 = vunpack.c.l.b16 %v291
        %v712 = vunpack.c.h.b16 %v291
        %v713 = vunpack.c.l.b16 %v292
        %v714 = vunpack.c.h.b16 %v292
        %v715 = vunpack.c.l.b16 %v293
        %v716 = vunpack.c.h.b16 %v293
        %v717 = vunpack.c.l.b16 %v294
        %v718 = vunpack.c.h.b16 %v294
        %v719 = vunpack.c.l.b16 %v295
        %v720 = vunpack.c.h.b16 %v295
        %v721 = vunpack.c.l.b16 %v296
        %v722 = vunpack.c.h.b16 %v296
        %v723 = vunpack.c.l.b16 %v297
        %v724 = vunpack.c.h.b16 %v297
        %v725 = vunpack.c.l.b16 %v298
        %v726 = vunpack.c.h.b16 %v298
        %v727 = vunpack.c.l.b16 %v299
        %v728 = vunpack.c.h.b16 %v299
        %v729 = vunpack.c.l.b16 %v300
        %v730 = vunpack.c.h.b16 %v300
        %v731 = vunpack.c.l.b16 %v301
        %v732 = vunpack.c.h.b16 %v301
        %v733 = vunpack.c.l.b16 %v302
        %v734 = vunpack.c.h.b16 %v302
        %v735 = vunpack.c.l.b16 %v303
        %v736 = vunpack.c.h.b16 %v303
        %v737 = vunpack.c.l.b16 %v304
        %v738 = vunpack.c.h.b16 %v304
        %v739 = vunpack.c.l.b16 %v305
        %v740 = vunpack.c.h.b16 %v305
        %v741 = vunpack.c.l.b16 %v306
        %v742 = vunpack.c.h.b16 %v306
        %v743 = vunpack.c.l.b16 %v307
        %v744 = vunpack.c.h.b16 %v307
        %v745 = vunpack.c.l.b16 %v308
        %v746 = vunpack.c.h.b16 %v308
        %v747 = vunpack.c.l.b16 %v309
        %v748 = vunpack.c.h.b16 %v309
        %v749 = vunpack.c.l.b16 %v310
        %v750 = vunpack.c.h.b16 %v310
        %v751 = vunpack.c.l.b16 %v311
        %v752 = vunpack.c.h.b16 %v311
        %v753 = vunpack.c.l.b16 %v312
        %v754 = vunpack.c.h.b16 %v312
        %v755 = vunpack.c.l.b16 %v313
        %v756 = vunpack.c.h.b16 %v313
        %v757 = vunpack.c.l.b16 %v314
        %v758 = vunpack.c.h.b16 %v314
        %v759 = vunpack.c.l.b16 %v315
        %v760 = vunpack.c.h.b16 %v315
        %v761 = vunpack.c.l.b16 %v316
        %v762 = vunpack.c.h.b16 %v316
        %v763 = vunpack.c.l.b16 %v317
        %v764 = vunpack.c.h.b16 %v317
        %v765 = vunpack.c.l.b16 %v318
        %v766 = vunpack.c.h.b16 %v318
        %v767 = vunpack.c.l.b16 %v319
        %v768 = vunpack.c.h.b16 %v319
        %v769 = vunpack.c.l.b16 %v320
        %v770 = vunpack.c.h.b16 %v320
        %v771 = vunpack.c.l.b16 %v321
        %v772 = vunpack.c.h.b16 %v321
        %v773 = vunpack.c.l.b16 %v322
        %v774 = vunpack.c.h.b16 %v322
        %v775 = vunpack.c.l.b16 %v323
        %v776 = vunpack.c.h.b16 %v323
        %v777 = vunpack.c.l.b16 %v324
        %v778 = vunpack.c.h.b16 %v324
        %v779 = vunpack.c.l.b16 %v325
        %v780 = vunpack.c.h.b16 %v325
        %v781 = vunpack.c.l.b16 %v326
        %v782 = vunpack.c.h.b16 %v326
        %v783 = vunpack.c.l.b16 %v327
        %v784 = vunpack.c.h.b16 %v327
        %v785 = vpack.c.b16 %v501, %v497
        %v786 = vpack.c.b16 %v502, %v498
        %v787 = vpack.c.b16 %v503, %v499
        %v788 = vpack.c.b16 %v504, %v500
        %v789 = vpack.c.b16 %v509, %v505
        %v790 = vpack.c.b16 %v510, %v506
        %v791 = vpack.c.b16 %v511, %v507
        %v792 = vpack.c.b16 %v512, %v508
        %v793 = vpack.c.b16 %v517, %v513
        %v794 = vpack.c.b16 %v518, %v514
        %v795 = vpack.c.b16 %v519, %v515
        %v796 = vpack.c.b16 %v520, %v516
        %v797 = vpack.c.b16 %v525, %v521
        %v798 = vpack.c.b16 %v526, %v522
        %v799 = vpack.c.b16 %v527, %v523
        %v800 = vpack.c.b16 %v528, %v524
        %v801 = vpack.c.b16 %v533, %v529
        %v802 = vpack.c.b16 %v534, %v530
        %v803 = vpack.c.b16 %v535, %v531
        %v804 = vpack.c.b16 %v536, %v532
        %v805 = vpack.c.b16 %v541, %v537
        %v806 = vpack.c.b16 %v542, %v538
        %v807 = vpack.c.b16 %v543, %v539
        %v808 = vpack.c.b16 %v544, %v540
        %v809 = vpack.c.b16 %v549, %v545
        %v810 = vpack.c.b16 %v550, %v546
        %v811 = vpack.c.b16 %v551, %v547
        %v812 = vpack.c.b16 %v552, %v548
        %v813 = vpack.c.b16 %v557, %v553
        %v814 = vpack.c.b16 %v558, %v554
        %v815 = vpack.c.b16 %v559, %v555
        %v816 = vpack.c.b16 %v560, %v556
        %v817 = vpack.c.b16 %v565, %v561
        %v818 = vpack.c.b16 %v566, %v562
        %v819 = vpack.c.b16 %v567, %v563
        %v820 = vpack.c.b16 %v568, %v564
        %v821 = vpack.c.b16 %v573, %v569
        %v822 = vpack.c.b16 %v574, %v570
        %v823 = vpack.c.b16 %v575, %v571
        %v824 = vpack.c.b16 %v576, %v572
        %v825 = vpack.c.b16 %v581, %v577
        %v826 = vpack.c.b16 %v582, %v578
        %v827 = vpack.c.b16 %v583, %v579
        %v828 = vpack.c.b16 %v584, %v580
        %v829 = vpack.c.b16 %v589, %v585
        %v830 = vpack.c.b16 %v590, %v586
        %v831 = vpack.c.b16 %v591, %v587
        %v832 = vpack.c.b16 %v592, %v588
        %v833 = vpack.c.b16 %v597, %v593
        %v834 = vpack.c.b16 %v598, %v594
        %v835 = vpack.c.b16 %v599, %v595
        %v836 = vpack.c.b16 %v600, %v596
        %v837 = vpack.c.b16 %v605, %v601
        %v838 = vpack.c.b16 %v606, %v602
        %v839 = vpack.c.b16 %v607, %v603
        %v840 = vpack.c.b16 %v608, %v604
        %v841 = vpack.c.b16 %v613, %v609
        %v842 = vpack.c.b16 %v614, %v610
        %v843 = vpack.c.b16 %v615, %v611
        %v844 = vpack.c.b16 %v616, %v612
        %v845 = vpack.c.b16 %v621, %v617
        %v846 = vpack.c.b16 %v622, %v618
        %v847 = vpack.c.b16 %v623, %v619
        %v848 = vpack.c.b16 %v624, %v620
        %v849 = vpack.c.b16 %v629, %v625
        %v850 = vpack.c.b16 %v630, %v626
        %v851 = vpack.c.b16 %v631, %v627
        %v852 = vpack.c.b16 %v632, %v628
        %v853 = vpack.c.b16 %v637, %v633
        %v854 = vpack.c.b16 %v638, %v634
        %v855 = vpack.c.b16 %v639, %v635
        %v856 = vpack.c.b16 %v640, %v636
        %v857 = vpack.c.b16 %v645, %v641
        %v858 = vpack.c.b16 %v646, %v642
        %v859 = vpack.c.b16 %v647, %v643
        %v860 = vpack.c.b16 %v648, %v644
        %v861 = vpack.c.b16 %v653, %v649
        %v862 = vpack.c.b16 %v654, %v650
        %v863 = vpack.c.b16 %v655, %v651
        %v864 = vpack.c.b16 %v656, %v652
        %v865 = vpack.c.b16 %v661, %v657
        %v866 = vpack.c.b16 %v662, %v658
        %v867 = vpack.c.b16 %v663, %v659
        %v868 = vpack.c.b16 %v664, %v660
        %v869 = vpack.c.b16 %v669, %v665
        %v870 = vpack.c.b16 %v670, %v666
        %v871 = vpack.c.b16 %v671, %v667
        %v872 = vpack.c.b16 %v672, %v668
        %v873 = vpack.c.b16 %v677, %v673
        %v874 = vpack.c.b16 %v678, %v674
        %v875 = vpack.c.b16 %v679, %v675
        %v876 = vpack.c.b16 %v680, %v676
        %v877 = vpack.c.b16 %v685, %v681
        %v878 = vpack.c.b16 %v686, %v682
        %v879 = vpack.c.b16 %v687, %v683
        %v880 = vpack.c.b16 %v688, %v684
        %v881 = vpack.c.b16 %v693, %v689
        %v882 = vpack.c.b16 %v694, %v690
        %v883 = vpack.c.b16 %v695, %v691
        %v884 = vpack.c.b16 %v696, %v692
        %v885 = vpack.c.b16 %v701, %v697
        %v886 = vpack.c.b16 %v702, %v698
        %v887 = vpack.c.b16 %v703, %v699
        %v888 = vpack.c.b16 %v704, %v700
        %v889 = vpack.c.b16 %v709, %v705
        %v890 = vpack.c.b16 %v710, %v706
        %v891 = vpack.c.b16 %v711, %v707
        %v892 = vpack.c.b16 %v712, %v708
        %v893 = vpack.c.b16 %v717, %v713
        %v894 = vpack.c.b16 %v718, %v714
        %v895 = vpack.c.b16 %v719, %v715
        %v896 = vpack.c.b16 %v720, %v716
        %v897 = vpack.c.b16 %v725, %v721
        %v898 = vpack.c.b16 %v726, %v722
        %v899 = vpack.c.b16 %v727, %v723
        %v900 = vpack.c.b16 %v728, %v724
        %v901 = vpack.c.b16 %v733, %v729
        %v902 = vpack.c.b16 %v734, %v730
        %v903 = vpack.c.b16 %v735, %v731
        %v904 = vpack.c.b16 %v736, %v732
        %v905 = vpack.c.b16 %v741, %v737
        %v906 = vpack.c.b16 %v742, %v738
        %v907 = vpack.c.b16 %v743, %v739
        %v908 = vpack.c.b16 %v744, %v740
        %v909 = vpack.c.b16 %v749, %v745
        %v910 = vpack.c.b16 %v750, %v746
        %v911 = vpack.c.b16 %v751, %v747
        %v912 = vpack.c.b16 %v752, %v748
        %v913 = vpack.c.b16 %v757, %v753
        %v914 = vpack.c.b16 %v758, %v754
        %v915 = vpack.c.b16 %v759, %v755
        %v916 = vpack.c.b16 %v760, %v756
        %v917 = vpack.c.b16 %v765, %v761
        %v918 = vpack.c.b16 %v766, %v762
        %v919 = vpack.c.b16 %v767, %v763
        %v920 = vpack.c.b16 %v768, %v764
        %v921 = vpack.c.b16 %v773, %v769
        %v922 = vpack.c.b16 %v774, %v770
        %v923 = vpack.c.b16 %v775, %v771
        %v924 = vpack.c.b16 %v776, %v772
        %v925 = vpack.c.b16 %v781, %v777
        %v926 = vpack.c.b16 %v782, %v778
        %v927 = vpack.c.b16 %v783, %v779
        %v928 = vpack.c.b16 %v784, %v780
        %vm1073 = vcmask 523264
        %v1075 = vsel %vm1073, %v348, 0
        %1077 = vmatprep.subr.bf16.mxu0 %v786
        %1078 = vmatpush1.bf16.msra.mxu0 %v785
        %1079 = vmatprep.subr.bf16.mxu0 %v790
        %1080 = vmatpush1.bf16.msra.mxu0 %v789
        %1081 = vmatprep.subr.bf16.mxu0 %v794
        %1082 = vmatpush1.bf16.msra.mxu0 %v793
        %1083 = vmatprep.subr.bf16.mxu0 %v798
        %1084 = vmatpush1.bf16.msra.mxu0 %v797
        %1085 = vmatprep.subr.bf16.mxu0 %v802
        %1086 = vmatpush1.bf16.msra.mxu0 %v801
        %1087 = vmatprep.subr.bf16.mxu0 %v806
        %1088 = vmatpush1.bf16.msra.mxu0 %v805
        %1089 = vmatprep.subr.bf16.mxu0 %v810
        %1090 = vmatpush1.bf16.msra.mxu0 %v809
        %1091 = vmatprep.subr.bf16.mxu0 %v814
        %1092 = vmatpush1.bf16.msra.mxu0 %v813
        %1093 = vmatprep.subr.bf16.mxu0 %v818
        %1094 = vmatpush1.bf16.msra.mxu0 %v817
        %1095 = vmatprep.subr.bf16.mxu0 %v822
        %1096 = vmatpush1.bf16.msra.mxu0 %v821
        %1097 = vmatprep.subr.bf16.mxu0 %v826
        %1098 = vmatpush1.bf16.msra.mxu0 %v825
        %1099 = vmatprep.subr.bf16.mxu0 %v830
        %1100 = vmatpush1.bf16.msra.mxu0 %v829
        %1101 = vmatprep.subr.bf16.mxu0 %v834
        %1102 = vmatpush1.bf16.msra.mxu0 %v833
        %1103 = vmatprep.subr.bf16.mxu0 %v838
        %1104 = vmatpush1.bf16.msra.mxu0 %v837
        %1105 = vmatprep.subr.bf16.mxu0 %v842
        %1106 = vmatpush1.bf16.msra.mxu0 %v841
        %1107 = vmatprep.subr.bf16.mxu0 %v846
        %1108 = vmatpush1.bf16.msra.mxu0 %v845
        %1109 = vmatprep.mubr.bf16.mxu0 %v345
        %1110 = vmatmul.mubr.bf16.gmra.mrb[0].mxu0 %v344
        %v1111 = vpop.f32.mrb[0].mxu0
        %v1112 = vadd.f32 0.0, %v1111
        %v1113 = vpop.f32.mrb[0].mxu0
        %v1114 = vadd.f32 0.0, %v1113
        %v1115 = vpop.f32.mrb[0].mxu0
        %v1116 = vadd.f32 0.0, %v1115
        %v1117 = vpop.f32.mrb[0].mxu0
        %v1118 = vadd.f32 0.0, %v1117
        %1119 = vdwg.mxu0
        %1120 = vmatprep.subr.bf16.mxu0 %v850
        %1121 = vmatpush1.bf16.msra.mxu0 %v849
        %1122 = vmatprep.subr.bf16.mxu0 %v854
        %1123 = vmatpush1.bf16.msra.mxu0 %v853
        %1124 = vmatprep.subr.bf16.mxu0 %v858
        %1125 = vmatpush1.bf16.msra.mxu0 %v857
        %1126 = vmatprep.subr.bf16.mxu0 %v862
        %1127 = vmatpush1.bf16.msra.mxu0 %v861
        %1128 = vmatprep.subr.bf16.mxu0 %v866
        %1129 = vmatpush1.bf16.msra.mxu0 %v865
        %1130 = vmatprep.subr.bf16.mxu0 %v870
        %1131 = vmatpush1.bf16.msra.mxu0 %v869
        %1132 = vmatprep.subr.bf16.mxu0 %v874
        %1133 = vmatpush1.bf16.msra.mxu0 %v873
        %1134 = vmatprep.subr.bf16.mxu0 %v878
        %1135 = vmatpush1.bf16.msra.mxu0 %v877
        %1136 = vmatprep.subr.bf16.mxu0 %v882
        %1137 = vmatpush1.bf16.msra.mxu0 %v881
        %1138 = vmatprep.subr.bf16.mxu0 %v886
        %1139 = vmatpush1.bf16.msra.mxu0 %v885
        %1140 = vmatprep.subr.bf16.mxu0 %v890
        %1141 = vmatpush1.bf16.msra.mxu0 %v889
        %1142 = vmatprep.subr.bf16.mxu0 %v894
        %1143 = vmatpush1.bf16.msra.mxu0 %v893
        %1144 = vmatprep.subr.bf16.mxu0 %v898
        %1145 = vmatpush1.bf16.msra.mxu0 %v897
        %1146 = vmatprep.subr.bf16.mxu0 %v902
        %1147 = vmatpush1.bf16.msra.mxu0 %v901
        %1148 = vmatprep.subr.bf16.mxu0 %v906
        %1149 = vmatpush1.bf16.msra.mxu0 %v905
        %1150 = vmatprep.subr.bf16.mxu0 %v910
        %1151 = vmatpush1.bf16.msra.mxu0 %v909
        %1152 = vmatprep.mubr.bf16.mxu0 %v347
        %1153 = vmatmul.mubr.bf16.gmra.mrb[0].mxu0 %v346
        %v1154 = vpop.f32.mrb[0].mxu0
        %v1155 = vadd.f32 %v1112, %v1154
        %v1156 = vpop.f32.mrb[0].mxu0
        %v1157 = vadd.f32 %v1114, %v1156
        %v1158 = vpop.f32.mrb[0].mxu0
        %v1159 = vadd.f32 %v1116, %v1158
        %v1160 = vpop.f32.mrb[0].mxu0
        %v1161 = vadd.f32 %v1118, %v1160
        %1162 = vdwg.mxu0
        %1163 = vmatprep.subr.bf16.mxu0 %v914
        %1164 = vmatpush1.bf16.msra.mxu0 %v913
        %1165 = vmatprep.subr.bf16.mxu0 %v918
        %1166 = vmatpush1.bf16.msra.mxu0 %v917
        %1167 = vmatprep.subr.bf16.mxu0 %v922
        %1168 = vmatpush1.bf16.msra.mxu0 %v921
        %1169 = vmatprep.subr.bf16.mxu0 %v926
        %1170 = vmatpush1.bf16.msra.mxu0 %v925
        %1171 = vmatprep.subr.bf16.mxu0 0
        %1172 = vmatpush1.bf16.msra.mxu0 0
        %1173 = vmatprep.subr.bf16.mxu0 0
        %1174 = vmatpush1.bf16.msra.mxu0 0
        %1175 = vmatprep.subr.bf16.mxu0 0
        %1176 = vmatpush1.bf16.msra.mxu0 0
        %1177 = vmatprep.subr.bf16.mxu0 0
        %1178 = vmatpush1.bf16.msra.mxu0 0
        %1179 = vmatprep.subr.bf16.mxu0 0
        %1180 = vmatpush1.bf16.msra.mxu0 0
        %1181 = vmatprep.subr.bf16.mxu0 0
        %1182 = vmatpush1.bf16.msra.mxu0 0
        %1183 = vmatprep.subr.bf16.mxu0 0
        %1184 = vmatpush1.bf16.msra.mxu0 0
        %1185 = vmatprep.subr.bf16.mxu0 0
        %1186 = vmatpush1.bf16.msra.mxu0 0
        %1187 = vmatprep.subr.bf16.mxu0 0
        %1188 = vmatpush1.bf16.msra.mxu0 0
        %1189 = vmatprep.subr.bf16.mxu0 0
        %1190 = vmatpush1.bf16.msra.mxu0 0
        %1191 = vmatprep.subr.bf16.mxu0 0
        %1192 = vmatpush1.bf16.msra.mxu0 0
        %1193 = vmatprep.subr.bf16.mxu0 0
        %1194 = vmatpush1.bf16.msra.mxu0 0
        %1195 = vmatprep.mubr.bf16.mxu0 0
        %1196 = vmatmul.mubr.bf16.gmra.mrb[0].mxu0 %v1075
        %v1197 = vpop.f32.mrb[0].mxu0
        %v1198 = vadd.f32 %v1155, %v1197
        %v1199 = vpop.f32.mrb[0].mxu0
        %v1200 = vadd.f32 %v1157, %v1199
        %v1201 = vpop.f32.mrb[0].mxu0
        %v1202 = vadd.f32 %v1159, %v1201
        %v1203 = vpop.f32.mrb[0].mxu0
        %v1204 = vadd.f32 %v1161, %v1203
        %1205 = vdwg.mxu0
        %1206 = vmatprep.subr.bf16.mxu0 %v788
        %1207 = vmatpush1.bf16.msra.mxu0 %v787
        %1208 = vmatprep.subr.bf16.mxu0 %v792
        %1209 = vmatpush1.bf16.msra.mxu0 %v791
        %1210 = vmatprep.subr.bf16.mxu0 %v796
        %1211 = vmatpush1.bf16.msra.mxu0 %v795
        %1212 = vmatprep.subr.bf16.mxu0 %v800
        %1213 = vmatpush1.bf16.msra.mxu0 %v799
        %1214 = vmatprep.subr.bf16.mxu0 %v804
        %1215 = vmatpush1.bf16.msra.mxu0 %v803
        %1216 = vmatprep.subr.bf16.mxu0 %v808
        %1217 = vmatpush1.bf16.msra.mxu0 %v807
        %1218 = vmatprep.subr.bf16.mxu0 %v812
        %1219 = vmatpush1.bf16.msra.mxu0 %v811
        %1220 = vmatprep.subr.bf16.mxu0 %v816
        %1221 = vmatpush1.bf16.msra.mxu0 %v815
        %1222 = vmatprep.subr.bf16.mxu0 %v820
        %1223 = vmatpush1.bf16.msra.mxu0 %v819
        %1224 = vmatprep.subr.bf16.mxu0 %v824
        %1225 = vmatpush1.bf16.msra.mxu0 %v823
        %1226 = vmatprep.subr.bf16.mxu0 %v828
        %1227 = vmatpush1.bf16.msra.mxu0 %v827
        %1228 = vmatprep.subr.bf16.mxu0 %v832
        %1229 = vmatpush1.bf16.msra.mxu0 %v831
        %1230 = vmatprep.subr.bf16.mxu0 %v836
        %1231 = vmatpush1.bf16.msra.mxu0 %v835
        %1232 = vmatprep.subr.bf16.mxu0 %v840
        %1233 = vmatpush1.bf16.msra.mxu0 %v839
        %1234 = vmatprep.subr.bf16.mxu0 %v844
        %1235 = vmatpush1.bf16.msra.mxu0 %v843
        %1236 = vmatprep.subr.bf16.mxu0 %v848
        %1237 = vmatpush1.bf16.msra.mxu0 %v847
        %1238 = vmatprep.mubr.bf16.mxu0 %v345
        %1239 = vmatmul.mubr.bf16.gmra.mrb[0].mxu0 %v344
        %v1240 = vpop.f32.mrb[0].mxu0
        %v1241 = vadd.f32 0.0, %v1240
        %v1242 = vpop.f32.mrb[0].mxu0
        %v1243 = vadd.f32 0.0, %v1242
        %v1244 = vpop.f32.mrb[0].mxu0
        %v1245 = vadd.f32 0.0, %v1244
        %v1246 = vpop.f32.mrb[0].mxu0
        %v1247 = vadd.f32 0.0, %v1246
        %1248 = vdwg.mxu0
        %1249 = vmatprep.subr.bf16.mxu0 %v852
        %1250 = vmatpush1.bf16.msra.mxu0 %v851
        %1251 = vmatprep.subr.bf16.mxu0 %v856
        %1252 = vmatpush1.bf16.msra.mxu0 %v855
        %1253 = vmatprep.subr.bf16.mxu0 %v860
        %1254 = vmatpush1.bf16.msra.mxu0 %v859
        %1255 = vmatprep.subr.bf16.mxu0 %v864
        %1256 = vmatpush1.bf16.msra.mxu0 %v863
        %1257 = vmatprep.subr.bf16.mxu0 %v868
        %1258 = vmatpush1.bf16.msra.mxu0 %v867
        %1259 = vmatprep.subr.bf16.mxu0 %v872
        %1260 = vmatpush1.bf16.msra.mxu0 %v871
        %1261 = vmatprep.subr.bf16.mxu0 %v876
        %1262 = vmatpush1.bf16.msra.mxu0 %v875
        %1263 = vmatprep.subr.bf16.mxu0 %v880
        %1264 = vmatpush1.bf16.msra.mxu0 %v879
        %1265 = vmatprep.subr.bf16.mxu0 %v884
        %1266 = vmatpush1.bf16.msra.mxu0 %v883
        %1267 = vmatprep.subr.bf16.mxu0 %v888
        %1268 = vmatpush1.bf16.msra.mxu0 %v887
        %1269 = vmatprep.subr.bf16.mxu0 %v892
        %1270 = vmatpush1.bf16.msra.mxu0 %v891
        %1271 = vmatprep.subr.bf16.mxu0 %v896
        %1272 = vmatpush1.bf16.msra.mxu0 %v895
        %1273 = vmatprep.subr.bf16.mxu0 %v900
        %1274 = vmatpush1.bf16.msra.mxu0 %v899
        %1275 = vmatprep.subr.bf16.mxu0 %v904
        %1276 = vmatpush1.bf16.msra.mxu0 %v903
        %1277 = vmatprep.subr.bf16.mxu0 %v908
        %1278 = vmatpush1.bf16.msra.mxu0 %v907
        %1279 = vmatprep.subr.bf16.mxu0 %v912
        %1280 = vmatpush1.bf16.msra.mxu0 %v911
        %1281 = vmatprep.mubr.bf16.mxu0 %v347
        %1282 = vmatmul.mubr.bf16.gmra.mrb[0].mxu0 %v346
        %v1283 = vpop.f32.mrb[0].mxu0
        %v1284 = vadd.f32 %v1241, %v1283
        %v1285 = vpop.f32.mrb[0].mxu0
        %v1286 = vadd.f32 %v1243, %v1285
        %v1287 = vpop.f32.mrb[0].mxu0
        %v1288 = vadd.f32 %v1245, %v1287
        %v1289 = vpop.f32.mrb[0].mxu0
        %v1290 = vadd.f32 %v1247, %v1289
        %1291 = vdwg.mxu0
        %1292 = vmatprep.subr.bf16.mxu0 %v916
        %1293 = vmatpush1.bf16.msra.mxu0 %v915
        %1294 = vmatprep.subr.bf16.mxu0 %v920
        %1295 = vmatpush1.bf16.msra.mxu0 %v919
        %1296 = vmatprep.subr.bf16.mxu0 %v924
        %1297 = vmatpush1.bf16.msra.mxu0 %v923
        %1298 = vmatprep.subr.bf16.mxu0 %v928
        %1299 = vmatpush1.bf16.msra.mxu0 %v927
        %1300 = vmatprep.subr.bf16.mxu0 0
        %1301 = vmatpush1.bf16.msra.mxu0 0
        %1302 = vmatprep.subr.bf16.mxu0 0
        %1303 = vmatpush1.bf16.msra.mxu0 0
        %1304 = vmatprep.subr.bf16.mxu0 0
        %1305 = vmatpush1.bf16.msra.mxu0 0
        %1306 = vmatprep.subr.bf16.mxu0 0
        %1307 = vmatpush1.bf16.msra.mxu0 0
        %1308 = vmatprep.subr.bf16.mxu0 0
        %1309 = vmatpush1.bf16.msra.mxu0 0
        %1310 = vmatprep.subr.bf16.mxu0 0
        %1311 = vmatpush1.bf16.msra.mxu0 0
        %1312 = vmatprep.subr.bf16.mxu0 0
        %1313 = vmatpush1.bf16.msra.mxu0 0
        %1314 = vmatprep.subr.bf16.mxu0 0
        %1315 = vmatpush1.bf16.msra.mxu0 0
        %1316 = vmatprep.subr.bf16.mxu0 0
        %1317 = vmatpush1.bf16.msra.mxu0 0
        %1318 = vmatprep.subr.bf16.mxu0 0
        %1319 = vmatpush1.bf16.msra.mxu0 0
        %1320 = vmatprep.subr.bf16.mxu0 0
        %1321 = vmatpush1.bf16.msra.mxu0 0
        %1322 = vmatprep.subr.bf16.mxu0 0
        %1323 = vmatpush1.bf16.msra.mxu0 0
        %1324 = vmatprep.mubr.bf16.mxu0 0
        %1325 = vmatmul.mubr.bf16.gmra.mrb[0].mxu0 %v1075
        %v1326 = vpop.f32.mrb[0].mxu0
        %v1327 = vadd.f32 %v1284, %v1326
        %v1328 = vpop.f32.mrb[0].mxu0
        %v1329 = vadd.f32 %v1286, %v1328
        %v1330 = vpop.f32.mrb[0].mxu0
        %v1331 = vadd.f32 %v1288, %v1330
        %v1332 = vpop.f32.mrb[0].mxu0
        %v1333 = vadd.f32 %v1290, %v1332
        %1334 = vdwg.mxu0
        %vm1343 = vcmask 1046528
        %v1344 = vrot.slane %v1198, 1
        %v1345 = vrot.slane %v1202, 1
        %v1346 = vsel %vm1343, %v1344, %v1345
        %v1347 = vrot.slane %v1200, 1
        %v1348 = vrot.slane %v1204, 1
        %v1349 = vsel %vm1343, %v1347, %v1348
        %v1350 = vrot.slane %v1327, 1
        %v1351 = vrot.slane %v1331, 1
        %v1352 = vsel %vm1343, %v1350, %v1351
        %v1353 = vrot.slane %v1329, 1
        %v1354 = vrot.slane %v1333, 1
        %v1355 = vsel %vm1343, %v1353, %v1354
        %v1364 = vsel %vm1343, %v1345, -inf
        %v1365 = vsel %vm1343, %v1348, -inf
        %v1366 = vsel %vm1343, %v1351, -inf
        %v1367 = vsel %vm1343, %v1354, -inf
        %vm1368 = vcmask 1040384
        %v1369 = vrot.slane %v1198, 7
        %v1370 = vrot.slane %v1200, 7
        %v1371 = vrot.slane %v1327, 7
        %v1372 = vrot.slane %v1329, 7
        %v1373 = vrot.slane %v1202, 7
        %v1374 = vsel %vm1368, %v1369, %v1373
        %v1375 = vrot.slane %v1204, 7
        %v1376 = vsel %vm1368, %v1370, %v1375
        %v1377 = vrot.slane %v1331, 7
        %v1378 = vsel %vm1368, %v1371, %v1377
        %v1379 = vrot.slane %v1333, 7
        %v1380 = vsel %vm1368, %v1372, %v1379
        %v1389 = vsel %vm1368, -inf, %v1369
        %v1390 = vsel %vm1368, -inf, %v1370
        %v1391 = vsel %vm1368, -inf, %v1371
        %v1392 = vsel %vm1368, -inf, %v1372
        %v1393 = vmax.f32 %v1198, %v1346
        %v1394 = vmax.f32 %v1200, %v1349
        %v1395 = vmax.f32 %v1327, %v1352
        %v1396 = vmax.f32 %v1329, %v1355
        %v1397 = vmax.f32 %v1202, %v1364
        %v1398 = vmax.f32 %v1204, %v1365
        %v1399 = vmax.f32 %v1331, %v1366
        %v1400 = vmax.f32 %v1333, %v1367
        %v1401 = vmax.f32 %v1393, %v1389
        %v1402 = vmax.f32 %v1394, %v1390
        %v1403 = vmax.f32 %v1395, %v1391
        %v1404 = vmax.f32 %v1396, %v1392
        %v1405 = vmax.f32 %v1397, %v1374
        %v1406 = vmax.f32 %v1398, %v1376
        %v1407 = vmax.f32 %v1399, %v1378
        %v1408 = vmax.f32 %v1400, %v1380
        %v1413 = vrot.slane %v1401, 1
        %v1414 = vrot.slane %v1402, 1
        %v1415 = vrot.slane %v1403, 1
        %v1416 = vrot.slane %v1404, 1
        %v1421 = vrot.slane %v1401, 2
        %v1422 = vrot.slane %v1402, 2
        %v1423 = vrot.slane %v1403, 2
        %v1424 = vrot.slane %v1404, 2
        %v1429 = vrot.slane %v1401, 3
        %v1430 = vrot.slane %v1402, 3
        %v1431 = vrot.slane %v1403, 3
        %v1432 = vrot.slane %v1404, 3
        %v1441 = vrot.slane %v1405, 4
        %v1442 = vrot.slane %v1406, 4
        %v1443 = vrot.slane %v1407, 4
        %v1444 = vrot.slane %v1408, 4
        %v1449 = vrot.slane %v1405, 5
        %v1450 = vrot.slane %v1406, 5
        %v1451 = vrot.slane %v1407, 5
        %v1452 = vrot.slane %v1408, 5
        %v1457 = vrot.slane %v1405, 6
        %v1458 = vrot.slane %v1406, 6
        %v1459 = vrot.slane %v1407, 6
        %v1460 = vrot.slane %v1408, 6
        %v1465 = vrot.slane %v1405, 7
        %v1466 = vrot.slane %v1406, 7
        %v1467 = vrot.slane %v1407, 7
        %v1468 = vrot.slane %v1408, 7
        %v1473 = vsel %vm1368, %v1401, %v1413
        %v1474 = vsel %vm1368, %v1402, %v1414
        %v1475 = vsel %vm1368, %v1403, %v1415
        %v1476 = vsel %vm1368, %v1404, %v1416
        %vm1477 = vcmask 1041408
        %v1478 = vsel %vm1477, %v1473, %v1421
        %v1479 = vsel %vm1477, %v1474, %v1422
        %v1480 = vsel %vm1477, %v1475, %v1423
        %v1481 = vsel %vm1477, %v1476, %v1424
        %vm1482 = vcmask 1042432
        %v1483 = vsel %vm1482, %v1478, %v1429
        %v1484 = vsel %vm1482, %v1479, %v1430
        %v1485 = vsel %vm1482, %v1480, %v1431
        %v1486 = vsel %vm1482, %v1481, %v1432
        %vm1487 = vcmask 1043456
        %v1488 = vsel %vm1487, %v1483, %v1441
        %v1489 = vsel %vm1487, %v1484, %v1442
        %v1490 = vsel %vm1487, %v1485, %v1443
        %v1491 = vsel %vm1487, %v1486, %v1444
        %vm1492 = vcmask 1044480
        %v1493 = vsel %vm1492, %v1488, %v1449
        %v1494 = vsel %vm1492, %v1489, %v1450
        %v1495 = vsel %vm1492, %v1490, %v1451
        %v1496 = vsel %vm1492, %v1491, %v1452
        %vm1497 = vcmask 1045504
        %v1498 = vsel %vm1497, %v1493, %v1457
        %v1499 = vsel %vm1497, %v1494, %v1458
        %v1500 = vsel %vm1497, %v1495, %v1459
        %v1501 = vsel %vm1497, %v1496, %v1460
        %v1502 = vsel %vm1343, %v1498, %v1465
        %v1503 = vsel %vm1343, %v1499, %v1466
        %v1504 = vsel %vm1343, %v1500, %v1467
        %v1505 = vsel %vm1343, %v1501, %v1468
        %1510 = vrot.lane.b32.xlu0 %v1502, 32
        %v1511 = vpop.permute.xlu0 %1510
        %1512 = vrot.lane.b32.xlu0 %v1503, 32
        %v1513 = vpop.permute.xlu0 %1512
        %1514 = vrot.lane.b32.xlu0 %v1504, 32
        %v1515 = vpop.permute.xlu0 %1514
        %1516 = vrot.lane.b32.xlu0 %v1505, 32
        %v1517 = vpop.permute.xlu0 %1516
        %vm1518 = vcmask 261120
        %v1519 = vsel %vm1518, %v1511, %v1513
        %v1520 = vsel %vm1518, %v1513, %v1515
        %v1521 = vsel %vm1518, %v1515, %v1517
        %v1526 = vsel %vm1518, -inf, %v1511
        %1527 = vrot.lane.b32.xlu0 %v1502, 96
        %v1528 = vpop.permute.xlu0 %1527
        %1529 = vrot.lane.b32.xlu0 %v1503, 96
        %v1530 = vpop.permute.xlu0 %1529
        %1531 = vrot.lane.b32.xlu0 %v1504, 96
        %v1532 = vpop.permute.xlu0 %1531
        %1533 = vrot.lane.b32.xlu0 %v1505, 96
        %v1534 = vpop.permute.xlu0 %1533
        %vm1535 = vcmask 785408
        %v1536 = vsel %vm1535, %v1528, %v1530
        %v1537 = vsel %vm1535, %v1530, %v1532
        %v1538 = vsel %vm1535, %v1532, %v1534
        %v1543 = vsel %vm1535, %v1534, -inf
        %v1544 = vmax.f32 %v1502, %v1526
        %v1545 = vmax.f32 %v1503, %v1519
        %v1546 = vmax.f32 %v1504, %v1520
        %v1547 = vmax.f32 %v1505, %v1521
        %v1548 = vmax.f32 %v1544, %v1536
        %v1549 = vmax.f32 %v1545, %v1537
        %v1550 = vmax.f32 %v1546, %v1538
        %v1551 = vmax.f32 %v1547, %v1543
        %1553 = vrot.lane.b32.xlu0 %v1548, 96
        %v1554 = vpop.permute.xlu0 %1553
        %1557 = vrot.lane.b32.xlu0 %v1549, 64
        %v1558 = vpop.permute.xlu0 %1557
        %1560 = vrot.lane.b32.xlu0 %v1549, 32
        %v1561 = vpop.permute.xlu0 %1560
        %1564 = vrot.lane.b32.xlu0 %v1550, 96
        %v1565 = vpop.permute.xlu0 %1564
        %1568 = vrot.lane.b32.xlu0 %v1551, 64
        %v1569 = vpop.permute.xlu0 %1568
        %1571 = vrot.lane.b32.xlu0 %v1551, 32
        %v1572 = vpop.permute.xlu0 %1571
        %v1574 = vsel %vm1518, %v1548, %v1554
        %v1575 = vsel %vm1073, %v1574, %v1558
        %v1576 = vsel %vm1535, %v1575, %v1561
        %v1577 = vsel %vm1518, %v1550, %v1565
        %v1578 = vsel %vm1073, %v1577, %v1569
        %v1579 = vsel %vm1535, %v1578, %v1572
        %1580 = vst [vmem:[%s176] sm:$0xff] %v1576
        %1581 = vst [vmem:[%s176 + $0x8] sm:$0xff] %v1579
        %s1582 = sand.u32 %s75, 1
        %s1583 = scalar_lea.sflag [#allocation4], %s1582
        %s1584 = sand.u32 %s75, 1
        %s1585 = smul.addr %s1584, 16
        %s1586 = scalar_lea.vmem [#allocation7], %s1585
        // Predicated region
        $region37: #{tpu_custom_call.1} parent=27 // pred_check
          %p1587 = pneg %p85
        $region38: #{tpu_custom_call.1} parent=27 // pred_check_branch
          %1589 = sbr.rel (%p1587) target = $region40
        $region39: #{tpu_custom_call.1} parent=27 // pred_region
          %s1591 = ssub.s32 256, 256
          %1592 = vsyncadd %s1583, %s1591
          %s1593 = smul.addr %s20, 2
          %s1594 = smul.addr %s1593, 128
          %s1595 = scalar_lea.hbm %s2, %s1594
          %s1597 = sshll.u32 %s1586, 4
          %s1598 = int_to_ptr.vmem [resolvable:$true] %s1597
          %1600 = dma.vmem_to_hbm [thread:$0]  %s1598, 256, %s1595, %s1583
        $region40: #{tpu_custom_call.1} parent=27 // pred_fallthru
          _
      $region28: #{tpu_custom_call.1} parent=5 // pred_fallthru
        _
      %p1601 = scmp.le.s32.totalorder 2, %s15
      // Predicated region
      $region41: #{tpu_custom_call.1} parent=5 // pred_check
        %p1602 = pneg %p1601
      $region42: #{tpu_custom_call.1} parent=5 // pred_check_branch
        %1604 = sbr.rel (%p1602) target = $region44
      $region43: #{tpu_custom_call.1} parent=5 // pred_region
        %s1605 = ssub.s32 %s15, 2
        // Predicated region
        $region45: #{tpu_custom_call.1} parent=43 // pred_check
          %p1606 = pneg %p91
        $region46: #{tpu_custom_call.1} parent=43 // pred_check_branch
          %1608 = sbr.rel (%p1606) target = $region48
        $region47: #{tpu_custom_call.1} parent=43 // pred_region
          %s1609 = sand.u32 %s76, 1
          %s1610 = scalar_lea.sflag [#allocation4], %s1609
          %s1611 = sand.u32 %s76, 1
          %s1612 = smul.addr %s1611, 16
          %s1613 = scalar_lea.vmem [#allocation7], %s1612
          %1614 = dma.done %s1610, 256
        $region48: #{tpu_custom_call.1} parent=43 // pred_fallthru
          _
      $region44: #{tpu_custom_call.1} parent=5 // pred_fallthru
        _
    $region6: #{tpu_custom_call.1} parent=1 // loop_footer
      %s19 = sadd.s32 1, %s15
    $region7: #{tpu_custom_call.1} parent=1 // loop_footer_branch
      %14 = sbr.rel target = $region3
    $region8: #{tpu_custom_call.1} parent=1 // loop_exit
      _
    %1615 = vsyncpa [#allocation3], 1
    %s1616 = scalar_lea.sflag [#allocation3], 1
    %1617 = vsyncpa %s1616, 1
    %1618 = vsyncpa [#allocation6], 1
    %1619 = vsyncpa [#allocation4], 1
    %s1620 = scalar_lea.sflag [#allocation4], 1
    %1621 = vsyncpa %s1620, 1

</llo_original>
